<compile_context>
chip_gen: v7x
topology: tpu7x:2x2x1
jax: 0.10.0
libtpu: 0.0.40
codegen_flags: <defaults>
</compile_context>

<pallas_src>
import functools

import jax
import jax.numpy as jnp
from jax.experimental import pallas as pl
from jax.experimental.pallas import tpu as pltpu

IN_CH, HID, OUT_CH, HEADS = 13, 256, 128, 16
# PyG BasicGNN/GAT layer plan:
#   layer 0:    GATConv(13,  256//16=16, heads=16, concat=True)  -> 256, ReLU
#   layers 1-2: GATConv(256, 16,         heads=16, concat=True)  -> 256, ReLU
#   layer 3:    GATConv(256, 128,        heads=16, concat=False) -> 128, no act
LAYER_CFG = [
    dict(f_in=IN_CH, out_c=HID // HEADS, concat=True),
    dict(f_in=HID,   out_c=HID // HEADS, concat=True),
    dict(f_in=HID,   out_c=HID // HEADS, concat=True),
    dict(f_in=HID,   out_c=OUT_CH,       concat=False),
]

NEG_INF = -1e30


def _round_up(v, m):
    return (v + m - 1) // m * m


def _compiler_params():
    # Destination-node tiles are independent -> "parallel" (sharded across TCs on v7x megacore).
    return pltpu.CompilerParams(
        dimension_semantics=("parallel",),
        vmem_limit_bytes=48 * 1024 * 1024,
    )


# ----------------------------- Pallas kernels ------------------------------ #

def proj_kernel(x_ref, w_ref, ws_ref, wd_ref, h_ref, as_ref, ad_ref):
    """Per-layer projections, hoisted out of the attention kernel (one pass over the nodes)."""
    x = x_ref[...]                                                         # [T, F]
    h_ref[...] = jnp.dot(x, w_ref[...], preferred_element_type=jnp.float32)    # [T, H*C]
    as_ref[...] = jnp.dot(x, ws_ref[...], preferred_element_type=jnp.float32)  # [T, H]
    ad_ref[...] = jnp.dot(x, wd_ref[...], preferred_element_type=jnp.float32)  # [T, H]


def _head_softmax_agg(a_d_h, a_s_row, add_mask, h_h):
    """One GAT head for one destination tile: score -> masked softmax -> aggregate. [T, C] f32."""
    s = a_d_h + a_s_row                                                    # [T,1]+[1,N] -> [T,N]
    e = jnp.maximum(s, 0.2 * s) + add_mask                                 # LeakyReLU(0.2) + 0/-1e30
    e = e - jnp.max(e, axis=-1, keepdims=True)
    p = jnp.exp(e)                                                         # non-edges underflow to 0
    inv = pl.reciprocal(jnp.sum(p, axis=-1, keepdims=True), approx=True)   # EUP
    return jnp.dot(p * inv, h_h, preferred_element_type=jnp.float32)       # [T, C]


def gat_concat_kernel(a_sT_ref, a_d_ref, h_hm_ref, mask_ref, bias_ref, out_ref, *, heads):
    """Concat GATConv layer + bias + ReLU for one destination tile (all heads per grid step)."""
    mask = mask_ref[...]                                                   # [T, N] additive mask
    a_sT = a_sT_ref[...]                                                   # [H, N]
    a_d = a_d_ref[...]                                                     # [H, T, 1]
    outs = []
    for h in range(heads):                                                 # static unroll
        outs.append(_head_softmax_agg(a_d[h], a_sT[h:h + 1, :], mask, h_hm_ref[h]))
    out = jnp.concatenate(outs, axis=-1)                                   # [T, H*C] lane-dense
    out_ref[...] = jnp.maximum(out + bias_ref[...], 0.0)                   # bias + inter-layer ReLU


def gat_final_kernel(a_sT_ref, a_d_ref, h_hm_ref, mask_ref, gb_ref,
                     fc_w_ref, fc_b_ref, ow_ref, ob_ref, out_ref, *, heads):
    """Last GATConv (mean over heads) fused with fc(128->256) and out(256->C_pad)."""
    mask = mask_ref[...]
    a_sT = a_sT_ref[...]
    a_d = a_d_ref[...]
    acc = _head_softmax_agg(a_d[0], a_sT[0:1, :], mask, h_hm_ref[0])
    for h in range(1, heads):
        acc = acc + _head_softmax_agg(a_d[h], a_sT[h:h + 1, :], mask, h_hm_ref[h])
    xg = acc * (1.0 / heads) + gb_ref[...]                                 # head mean + GAT bias
    h1 = jnp.dot(xg, fc_w_ref[...], preferred_element_type=jnp.float32) + fc_b_ref[...]   # 128->256
    y = jnp.dot(h1, ow_ref[...], preferred_element_type=jnp.float32) + ob_ref[...]        # 256->C_pad
    out_ref[...] = y                                                       # lane-dense store


# ------------------------------ Wrappers ----------------------------------- #

def gat_projection(x, w, ws, wd, *, tile_n):
    n_pad, f_pad = x.shape
    hc = w.shape[1]
    heads = ws.shape[1]
    return pl.pallas_call(
        proj_kernel,
        out_shape=(jax.ShapeDtypeStruct((n_pad, hc), jnp.float32),
                   jax.ShapeDtypeStruct((n_pad, heads), jnp.float32),
                   jax.ShapeDtypeStruct((n_pad, heads), jnp.float32)),
        grid=(n_pad // tile_n,),
        in_specs=[
            pl.BlockSpec((tile_n, f_pad), lambda i: (i, 0)),
            pl.BlockSpec((f_pad, hc), lambda i: (0, 0)),
            pl.BlockSpec((f_pad, heads), lambda i: (0, 0)),
            pl.BlockSpec((f_pad, heads), lambda i: (0, 0)),
        ],
        out_specs=(pl.BlockSpec((tile_n, hc), lambda i: (i, 0)),
                   pl.BlockSpec((tile_n, heads), lambda i: (i, 0)),
                   pl.BlockSpec((tile_n, heads), lambda i: (i, 0))),
        compiler_params=_compiler_params(),
    )(x, w, ws, wd)


def gat_attention_concat(a_sT, a_d_hm, h_hm, mask, bias, *, tile_n):
    heads, n_pad, c = h_hm.shape
    kernel = functools.partial(gat_concat_kernel, heads=heads)
    return pl.pallas_call(
        kernel,
        out_shape=jax.ShapeDtypeStruct((n_pad, heads * c), jnp.float32),
        grid=(n_pad // tile_n,),
        in_specs=[
            pl.BlockSpec((heads, n_pad), lambda i: (0, 0)),       # source scores (resident)
            pl.BlockSpec((heads, tile_n, 1), lambda i: (0, i, 0)),  # dest scores, this tile
            pl.BlockSpec((heads, n_pad, c), lambda i: (0, 0, 0)),   # head-major projections (resident)
            pl.BlockSpec((tile_n, n_pad), lambda i: (i, 0)),        # additive edge mask tile
            pl.BlockSpec((1, heads * c), lambda i: (0, 0)),         # GAT bias
        ],
        out_specs=pl.BlockSpec((tile_n, heads * c), lambda i: (i, 0)),
        compiler_params=_compiler_params(),
    )(a_sT, a_d_hm, h_hm, mask, bias)


def gat_final_fused(a_sT, a_d_hm, h_hm, mask, gat_bias, fc_w, fc_b, out_w, out_b, *, tile_n):
    heads, n_pad, c = h_hm.shape
    c_out = out_w.shape[1]
    kernel = functools.partial(gat_final_kernel, heads=heads)
    return pl.pallas_call(
        kernel,
        out_shape=jax.ShapeDtypeStruct((n_pad, c_out), jnp.float32),
        grid=(n_pad // tile_n,),
        in_specs=[
            pl.BlockSpec((heads, n_pad), lambda i: (0, 0)),
            pl.BlockSpec((heads, tile_n, 1), lambda i: (0, i, 0)),
            pl.BlockSpec((heads, n_pad, c), lambda i: (0, 0, 0)),
            pl.BlockSpec((tile_n, n_pad), lambda i: (i, 0)),
            pl.BlockSpec((1, c), lambda i: (0, 0)),                 # GAT bias [1, 128]
            pl.BlockSpec(fc_w.shape, lambda i: (0, 0)),
            pl.BlockSpec(fc_b.shape, lambda i: (0, 0)),
            pl.BlockSpec(out_w.shape, lambda i: (0, 0)),
            pl.BlockSpec(out_b.shape, lambda i: (0, 0)),
        ],
        out_specs=pl.BlockSpec((tile_n, c_out), lambda i: (i, 0)),
        compiler_params=_compiler_params(),
    )(a_sT, a_d_hm, h_hm, mask, gat_bias, fc_w, fc_b, out_w, out_b)


# ------------------------- Parameters / model glue -------------------------- #

def init_params(key, num_classes):
    params = {"gat": []}
    for cfg in LAYER_CFG:
        key, kw, ks, kd = jax.random.split(key, 4)
        f_in, c = cfg["f_in"], cfg["out_c"]
        scale = 1.0 / jnp.sqrt(jnp.float32(f_in))
        out_dim = HEADS * c if cfg["concat"] else c
        params["gat"].append(dict(
            w=jax.random.normal(kw, (f_in, HEADS * c), jnp.float32) * scale,
            att_src=jax.random.normal(ks, (HEADS, c), jnp.float32) * 0.1,
            att_dst=jax.random.normal(kd, (HEADS, c), jnp.float32) * 0.1,
            bias=jnp.zeros((1, out_dim), jnp.float32),
        ))
    key, k1, k2 = jax.random.split(key, 3)
    params["fc_w"] = jax.random.normal(k1, (OUT_CH, 256), jnp.float32) / jnp.sqrt(128.0)
    params["fc_b"] = jnp.zeros((1, 256), jnp.float32)
    params["out_w"] = jax.random.normal(k2, (256, num_classes), jnp.float32) / jnp.sqrt(256.0)
    params["out_b"] = jnp.zeros((1, num_classes), jnp.float32)
    return params


def _prep_gat_weights(p, out_c):
    """Zero-pad F to a lane multiple and fold the attention vectors into the projection."""
    w = p["w"]                                                             # [f_in, H*C]
    f_in = w.shape[0]
    f_pad = _round_up(f_in, 128)
    w = jnp.pad(w, ((0, f_pad - f_in), (0, 0)))
    w_hc = w.reshape(f_pad, HEADS, out_c)
    ws = jnp.einsum("fhc,hc->fh", w_hc, p["att_src"])                      # [F, H] source score proj
    wd = jnp.einsum("fhc,hc->fh", w_hc, p["att_dst"])                      # [F, H] dest   score proj
    return w, ws, wd


def build_add_mask(edge_index, n, n_pad):
    # mask[i, j] = 0 iff edge j -> i (plus self loops, GATConv default add_self_loops=True),
    # else -1e30.  Dense mask collapses duplicate parallel edges into one entry.
    src, dst = edge_index[0], edge_index[1]
    adj = jnp.zeros((n_pad, n_pad), jnp.bool_)
    adj = adj.at[dst, src].set(True)
    idx = jnp.arange(n)
    adj = adj.at[idx, idx].set(True)
    return jnp.where(adj, 0.0, NEG_INF).astype(jnp.float32)


def geometric_forward(x, edge_index, params, num_classes, *, tile_n=256):
    n = x.shape[0]
    tile = min(tile_n, _round_up(n, 8))
    n_pad = _round_up(n, tile)
    mask = build_add_mask(edge_index, n, n_pad)

    # Layer-0 input: pad nodes to n_pad and features 13 -> 128 (lane aligned).
    f0_pad = _round_up(x.shape[1], 128)
    h = jnp.pad(x, ((0, n_pad - n), (0, f0_pad - x.shape[1]))).astype(jnp.float32)

    y = None
    for cfg, p in zip(LAYER_CFG, params["gat"]):
        w, ws, wd = _prep_gat_weights(p, cfg["out_c"])
        c = cfg["out_c"]
        # Hoisted projections: one full-width matmul per layer.
        h_cat, a_src, a_dst = gat_projection(h, w, ws, wd, tile_n=tile)
        # Cheap [N,16]-sized re-layouts in the wrapper (head-major views for the attention kernel).
        h_hm = h_cat.reshape(n_pad, HEADS, c).transpose(1, 0, 2)           # [H, N, C]
        a_sT = a_src.T                                                     # [H, N]
        a_d_hm = a_dst.T[:, :, None]                                       # [H, N, 1]
        if cfg["concat"]:
            h = gat_attention_concat(a_sT, a_d_hm, h_hm, mask, p["bias"], tile_n=tile)
        else:
            c_pad = _round_up(num_classes, 128)
            out_w = jnp.pad(params["out_w"], ((0, 0), (0, c_pad - num_classes)))
            out_b = jnp.pad(params["out_b"], ((0, 0), (0, c_pad - num_classes)))
            y = gat_final_fused(a_sT, a_d_hm, h_hm, mask, p["bias"],
                                params["fc_w"], params["fc_b"], out_w, out_b, tile_n=tile)
    return y[:n, :num_classes]


# --------------------------------- Main ------------------------------------ #

if __name__ == "__main__":
    key = jax.random.PRNGKey(0)
    N, E, NUM_CLASSES = 32, 96, 4
    k_x, k_s, k_d, k_p = jax.random.split(key, 4)

    x = jax.random.normal(k_x, (N, IN_CH), jnp.float32)
    src = jax.random.randint(k_s, (E,), 0, N)
    dst = jax.random.randint(k_d, (E,), 0, N)
    edge_index = jnp.stack([src, dst], axis=0)        # [2, E], COO (source, target)

    params = init_params(k_p, NUM_CLASSES)

    y = geometric_forward(x, edge_index, params, NUM_CLASSES)
    jax.block_until_ready(y)
    assert y.shape == (N, NUM_CLASSES) and y.dtype == jnp.float32
    print("KERNEL_OK")
</pallas_src>

<mosaic_0001>
module attributes {stable_mosaic.version = 11 : i64} {
  func.func @proj_kernel(%arg0: i32, %arg1: memref<32x128xf32, #tpu.memory_space<vmem>>, %arg2: memref<128x256xf32, #tpu.memory_space<vmem>>, %arg3: memref<128x16xf32, #tpu.memory_space<vmem>>, %arg4: memref<128x16xf32, #tpu.memory_space<vmem>>, %arg5: memref<32x256xf32, #tpu.memory_space<vmem>>, %arg6: memref<32x16xf32, #tpu.memory_space<vmem>>, %arg7: memref<32x16xf32, #tpu.memory_space<vmem>>) attributes {dimension_semantics = [#tpu.dimension_semantics<parallel>], iteration_bounds = array<i64: 1>, scalar_prefetch = 0 : i64, scratch_operands = 0 : i64, tpu.core_type = #tpu.core_type<tc>, window_params = [{transform_indices = @transform_0, window_bounds = array<i64: 32, 128>}, {pipeline_mode = #tpu.pipeline_mode<synchronous>, transform_indices = @transform_1, window_bounds = array<i64: 128, 256>}, {pipeline_mode = #tpu.pipeline_mode<synchronous>, transform_indices = @transform_2, window_bounds = array<i64: 128, 16>}, {pipeline_mode = #tpu.pipeline_mode<synchronous>, transform_indices = @transform_3, window_bounds = array<i64: 128, 16>}, {transform_indices = @transform_4, window_bounds = array<i64: 32, 256>}, {transform_indices = @transform_5, window_bounds = array<i64: 32, 16>}, {transform_indices = @transform_6, window_bounds = array<i64: 32, 16>}]} {
    %c0 = arith.constant 0 : index
    %c0_0 = arith.constant 0 : index
    %0 = vector.load %arg1[%c0, %c0_0] : memref<32x128xf32, #tpu.memory_space<vmem>>, vector<32x128xf32>
    %c0_1 = arith.constant 0 : index
    %c0_2 = arith.constant 0 : index
    %1 = vector.load %arg2[%c0_1, %c0_2] : memref<128x256xf32, #tpu.memory_space<vmem>>, vector<128x256xf32>
    %cst = arith.constant dense<0.000000e+00> : vector<32x256xf32>
    %2 = tpu.matmul %0, %1, %cst {dimension_numbers = #tpu.dot_dimension_numbers<[1], [0], [0], [1], [0, 0, 1, 1], [], []>} : vector<32x128xf32>, vector<128x256xf32>, vector<32x256xf32> -> vector<32x256xf32>
    %c0_3 = arith.constant 0 : index
    %c0_4 = arith.constant 0 : index
    %3 = vector.load %arg5[%c0_3, %c0_4] : memref<32x256xf32, #tpu.memory_space<vmem>>, vector<32x256xf32>
    tpu.vector_store %arg5[%c0_3, %c0_4], %2 {strides = array<i32>} : memref<32x256xf32, #tpu.memory_space<vmem>>, vector<32x256xf32>,
    %c0_5 = arith.constant 0 : index
    %c0_6 = arith.constant 0 : index
    %4 = vector.load %arg3[%c0_5, %c0_6] : memref<128x16xf32, #tpu.memory_space<vmem>>, vector<128x16xf32>
    %cst_7 = arith.constant dense<0.000000e+00> : vector<32x16xf32>
    %5 = tpu.matmul %0, %4, %cst_7 {dimension_numbers = #tpu.dot_dimension_numbers<[1], [0], [0], [1], [0, 0, 1, 1], [], []>} : vector<32x128xf32>, vector<128x16xf32>, vector<32x16xf32> -> vector<32x16xf32>
    %c0_8 = arith.constant 0 : index
    %c0_9 = arith.constant 0 : index
    %6 = vector.load %arg6[%c0_8, %c0_9] : memref<32x16xf32, #tpu.memory_space<vmem>>, vector<32x16xf32>
    tpu.vector_store %arg6[%c0_8, %c0_9], %5 {strides = array<i32>} : memref<32x16xf32, #tpu.memory_space<vmem>>, vector<32x16xf32>,
    %c0_10 = arith.constant 0 : index
    %c0_11 = arith.constant 0 : index
    %7 = vector.load %arg4[%c0_10, %c0_11] : memref<128x16xf32, #tpu.memory_space<vmem>>, vector<128x16xf32>
    %cst_12 = arith.constant dense<0.000000e+00> : vector<32x16xf32>
    %8 = tpu.matmul %0, %7, %cst_12 {dimension_numbers = #tpu.dot_dimension_numbers<[1], [0], [0], [1], [0, 0, 1, 1], [], []>} : vector<32x128xf32>, vector<128x16xf32>, vector<32x16xf32> -> vector<32x16xf32>
    %c0_13 = arith.constant 0 : index
    %c0_14 = arith.constant 0 : index
    %9 = vector.load %arg7[%c0_13, %c0_14] : memref<32x16xf32, #tpu.memory_space<vmem>>, vector<32x16xf32>
    tpu.vector_store %arg7[%c0_13, %c0_14], %8 {strides = array<i32>} : memref<32x16xf32, #tpu.memory_space<vmem>>, vector<32x16xf32>,
    return
  }
  func.func @transform_0(%arg0: i32) -> (i32, i32) {
    %c0_i32 = arith.constant 0 : i32
    %c0_i32_0 = arith.constant 0 : i32
    return %arg0, %c0_i32 : i32, i32
  }
  func.func @transform_1(%arg0: i32) -> (i32, i32) {
    %c0_i32 = arith.constant 0 : i32
    %c0_i32_0 = arith.constant 0 : i32
    %c0_i32_1 = arith.constant 0 : i32
    return %c0_i32, %c0_i32_0 : i32, i32
  }
  func.func @transform_2(%arg0: i32) -> (i32, i32) {
    %c0_i32 = arith.constant 0 : i32
    %c0_i32_0 = arith.constant 0 : i32
    %c0_i32_1 = arith.constant 0 : i32
    return %c0_i32, %c0_i32_0 : i32, i32
  }
  func.func @transform_3(%arg0: i32) -> (i32, i32) {
    %c0_i32 = arith.constant 0 : i32
    %c0_i32_0 = arith.constant 0 : i32
    %c0_i32_1 = arith.constant 0 : i32
    return %c0_i32, %c0_i32_0 : i32, i32
  }
  func.func @transform_4(%arg0: i32) -> (i32, i32) {
    %c0_i32 = arith.constant 0 : i32
    %c0_i32_0 = arith.constant 0 : i32
    return %arg0, %c0_i32 : i32, i32
  }
  func.func @transform_5(%arg0: i32) -> (i32, i32) {
    %c0_i32 = arith.constant 0 : i32
    %c0_i32_0 = arith.constant 0 : i32
    return %arg0, %c0_i32 : i32, i32
  }
  func.func @transform_6(%arg0: i32) -> (i32, i32) {
    %c0_i32 = arith.constant 0 : i32
    %c0_i32_0 = arith.constant 0 : i32
    return %arg0, %c0_i32 : i32, i32
  }
}

</mosaic_0001>

<llo_original>
// kernel: tpu_custom_call.1
$region0: #{tpu_custom_call.1}
  #allocation0 [shape = 'u32[]', space=smem, size = 0x4, offset = 0x4, fixed_abs, tag = 'smem constant byte address 0x4 - core index']
  #allocation1 [shape = 'u32[144,128]{1,0:T(1,128)}', space=vmem, size = 0x12000, scoped, tag = 'internal scratch']
  %s0 = inlined_call_operand.vmem [shape: f32[32,128], index: 0, kind: input, shape index: {}]
  %s1 = inlined_call_operand.vmem [shape: f32[128,256], index: 1, kind: input, shape index: {}]
  %s2 = inlined_call_operand.vmem [shape: f32[128,16], index: 2, kind: input, shape index: {}]
  %s3 = inlined_call_operand.vmem [shape: f32[128,16], index: 3, kind: input, shape index: {}]
  %s4 = inlined_call_operand.hbm [shape: f32[32,256], index: 4, kind: output, shape index: {0}]
  %s5 = inlined_call_operand.vmem [shape: f32[32,16], index: 5, kind: output, shape index: {1}]
  %s6 = inlined_call_operand.vmem [shape: f32[32,16], index: 6, kind: output, shape index: {2}]
  %7 = xla_tuple %s4, %s5, %s6
  %s8 = sld [smem:[#allocation0]]
  $region42: #{tpu_custom_call.1} parent=0
    _
  %s10 = ssub.s32 1, %s8
  %s11 = scalar_select 0, %s10, %s8
  $region1: #{tpu_custom_call.1} parent=0
    #allocation2 [shape = 'u8[32768]{0}', space=vmem, size = 0x8000, scoped, tag = 'output window, operand 0, single buffered']
    #allocation3 [shape = 's32[1]{0}', space=sflag, size = 0x4, scoped, tag = 'scoped memory for tpu_custom_call.1']
    %12 = vsyncpa [#allocation3], 0
    // Predicated region
    $region2: #{tpu_custom_call.1} parent=1 // pred_check
      _
    $region3: #{tpu_custom_call.1} parent=1 // pred_check_branch
      %14 = sbr.rel (0) target = $region5
    $region4: #{tpu_custom_call.1} parent=1 // pred_region
      _
    $region5: #{tpu_custom_call.1} parent=1 // pred_fallthru
      _
    // Predicated region
    $region6: #{tpu_custom_call.1} parent=1 // pred_check
      _
    $region7: #{tpu_custom_call.1} parent=1 // pred_check_branch
      %16 = sbr.rel (0) target = $region9
    $region8: #{tpu_custom_call.1} parent=1 // pred_region
      _
    $region9: #{tpu_custom_call.1} parent=1 // pred_fallthru
      _
    // Predicated region
    $region10: #{tpu_custom_call.1} parent=1 // pred_check
      _
    $region11: #{tpu_custom_call.1} parent=1 // pred_check_branch
      %18 = sbr.rel (0) target = $region13
    $region12: #{tpu_custom_call.1} parent=1 // pred_region
      _
    $region13: #{tpu_custom_call.1} parent=1 // pred_fallthru
      _
    // Predicated region
    $region14: #{tpu_custom_call.1} parent=1 // pred_check
      _
    $region15: #{tpu_custom_call.1} parent=1 // pred_check_branch
      %20 = sbr.rel (0) target = $region17
    $region16: #{tpu_custom_call.1} parent=1 // pred_region
      _
    $region17: #{tpu_custom_call.1} parent=1 // pred_fallthru
      _
    %v21 = vld [vmem:[%s0] sm:$0xff]
    %v22 = vld [vmem:[%s0 + $0x8] sm:$0xff]
    %v23 = vld [vmem:[%s0 + $0x10] sm:$0xff]
    %v24 = vld [vmem:[%s0 + $0x18] sm:$0xff]
    %v25 = vld [vmem:[%s1] sm:$0xff]
    %v26 = vld [vmem:[%s1 + $0x8] sm:$0xff]
    %v27 = vld [vmem:[%s1 + $0x10] sm:$0xff]
    %v28 = vld [vmem:[%s1 + $0x18] sm:$0xff]
    %v29 = vld [vmem:[%s1 + $0x20] sm:$0xff]
    %v30 = vld [vmem:[%s1 + $0x28] sm:$0xff]
    %v31 = vld [vmem:[%s1 + $0x30] sm:$0xff]
    %v32 = vld [vmem:[%s1 + $0x38] sm:$0xff]
    %v33 = vld [vmem:[%s1 + $0x40] sm:$0xff]
    %v34 = vld [vmem:[%s1 + $0x48] sm:$0xff]
    %v35 = vld [vmem:[%s1 + $0x50] sm:$0xff]
    %v36 = vld [vmem:[%s1 + $0x58] sm:$0xff]
    %v37 = vld [vmem:[%s1 + $0x60] sm:$0xff]
    %v38 = vld [vmem:[%s1 + $0x68] sm:$0xff]
    %v39 = vld [vmem:[%s1 + $0x70] sm:$0xff]
    %v40 = vld [vmem:[%s1 + $0x78] sm:$0xff]
    %v41 = vld [vmem:[%s1 + $0x80] sm:$0xff]
    %v42 = vld [vmem:[%s1 + $0x88] sm:$0xff]
    %v43 = vld [vmem:[%s1 + $0x90] sm:$0xff]
    %v44 = vld [vmem:[%s1 + $0x98] sm:$0xff]
    %v45 = vld [vmem:[%s1 + $0xa0] sm:$0xff]
    %v46 = vld [vmem:[%s1 + $0xa8] sm:$0xff]
    %v47 = vld [vmem:[%s1 + $0xb0] sm:$0xff]
    %v48 = vld [vmem:[%s1 + $0xb8] sm:$0xff]
    %v49 = vld [vmem:[%s1 + $0xc0] sm:$0xff]
    %v50 = vld [vmem:[%s1 + $0xc8] sm:$0xff]
    %v51 = vld [vmem:[%s1 + $0xd0] sm:$0xff]
    %v52 = vld [vmem:[%s1 + $0xd8] sm:$0xff]
    %v53 = vld [vmem:[%s1 + $0xe0] sm:$0xff]
    %v54 = vld [vmem:[%s1 + $0xe8] sm:$0xff]
    %v55 = vld [vmem:[%s1 + $0xf0] sm:$0xff]
    %v56 = vld [vmem:[%s1 + $0xf8] sm:$0xff]
    %57 = vmatprep.subr.mxu0 %v26
    %58 = vmatpush1.msra.mxu0 %v25
    %59 = vmatprep.subr.mxu0 %v28
    %60 = vmatpush1.msra.mxu0 %v27
    %61 = vmatprep.subr.mxu0 %v30
    %62 = vmatpush1.msra.mxu0 %v29
    %63 = vmatprep.subr.mxu0 %v32
    %64 = vmatpush1.msra.mxu0 %v31
    %65 = vmatprep.subr.mxu0 %v34
    %66 = vmatpush1.msra.mxu0 %v33
    %67 = vmatprep.subr.mxu0 %v36
    %68 = vmatpush1.msra.mxu0 %v35
    %69 = vmatprep.subr.mxu0 %v38
    %70 = vmatpush1.msra.mxu0 %v37
    %71 = vmatprep.subr.mxu0 %v40
    %72 = vmatpush1.msra.mxu0 %v39
    %73 = vmatprep.subr.mxu0 %v42
    %74 = vmatpush1.msra.mxu0 %v41
    %75 = vmatprep.subr.mxu0 %v44
    %76 = vmatpush1.msra.mxu0 %v43
    %77 = vmatprep.subr.mxu0 %v46
    %78 = vmatpush1.msra.mxu0 %v45
    %79 = vmatprep.subr.mxu0 %v48
    %80 = vmatpush1.msra.mxu0 %v47
    %81 = vmatprep.subr.mxu0 %v50
    %82 = vmatpush1.msra.mxu0 %v49
    %83 = vmatprep.subr.mxu0 %v52
    %84 = vmatpush1.msra.mxu0 %v51
    %85 = vmatprep.subr.mxu0 %v54
    %86 = vmatpush1.msra.mxu0 %v53
    %87 = vmatprep.subr.mxu0 %v56
    %88 = vmatpush1.msra.mxu0 %v55
    %89 = vmatprep.subr.mxu0 0.0
    %90 = vmatpush1.msra.mxu0 0.0
    %91 = vmatprep.subr.mxu0 0.0
    %92 = vmatpush1.msra.mxu0 0.0
    %93 = vmatprep.subr.mxu0 0.0
    %94 = vmatpush1.msra.mxu0 0.0
    %95 = vmatprep.subr.mxu0 0.0
    %96 = vmatpush1.msra.mxu0 0.0
    %97 = vmatprep.subr.mxu0 0.0
    %98 = vmatpush1.msra.mxu0 0.0
    %99 = vmatprep.subr.mxu0 0.0
    %100 = vmatpush1.msra.mxu0 0.0
    %101 = vmatprep.subr.mxu0 0.0
    %102 = vmatpush1.msra.mxu0 0.0
    %103 = vmatprep.subr.mxu0 0.0
    %104 = vmatpush1.msra.mxu0 0.0
    %105 = vmatprep.subr.mxu0 0.0
    %106 = vmatpush1.msra.mxu0 0.0
    %107 = vmatprep.subr.mxu0 0.0
    %108 = vmatpush1.msra.mxu0 0.0
    %109 = vmatprep.subr.mxu0 0.0
    %110 = vmatpush1.msra.mxu0 0.0
    %111 = vmatprep.subr.mxu0 0.0
    %112 = vmatpush1.msra.mxu0 0.0
    %113 = vmatprep.subr.mxu0 0.0
    %114 = vmatpush1.msra.mxu0 0.0
    %115 = vmatprep.subr.mxu0 0.0
    %116 = vmatpush1.msra.mxu0 0.0
    %117 = vmatprep.subr.mxu0 0.0
    %118 = vmatpush1.msra.mxu0 0.0
    %119 = vmatprep.subr.mxu0 0.0
    %120 = vmatpush1.msra.mxu0 0.0
    %121 = vmatprep.mubr.f32.mxu0 0.0
    %122 = vmatmul.mubr.f32.gmra.mrb[0].mxu0 %v21
    %v123 = vpop.f32.mrb[0].mxu0
    %v124 = vadd.f32 0.0, %v123
    %v125 = vpop.f32.mrb[0].mxu0
    %v126 = vadd.f32 0.0, %v125
    %127 = vmatprep.mubr.f32.mxu0 0.0
    %128 = vmatmul.mubr.f32.gmra.mrb[0].mxu0 %v22
    %v129 = vpop.f32.mrb[0].mxu0
    %v130 = vadd.f32 0.0, %v129
    %v131 = vpop.f32.mrb[0].mxu0
    %v132 = vadd.f32 0.0, %v131
    %133 = vmatprep.mubr.f32.mxu0 0.0
    %134 = vmatmul.mubr.f32.gmra.mrb[0].mxu0 %v23
    %v135 = vpop.f32.mrb[0].mxu0
    %v136 = vadd.f32 0.0, %v135
    %v137 = vpop.f32.mrb[0].mxu0
    %v138 = vadd.f32 0.0, %v137
    %139 = vmatprep.mubr.f32.mxu0 0.0
    %140 = vmatmul.mubr.f32.gmra.mrb[0].mxu0 %v24
    %v141 = vpop.f32.mrb[0].mxu0
    %v142 = vadd.f32 0.0, %v141
    %v143 = vpop.f32.mrb[0].mxu0
    %v144 = vadd.f32 0.0, %v143
    %145 = vdwg.mxu0
    %146 = vst [vmem:[#allocation2] sm:$0xff] %v124
    %147 = vst [vmem:[#allocation2 + $0x8] sm:$0xff] %v126
    %148 = vst [vmem:[#allocation2 + $0x10] sm:$0xff] %v130
    %149 = vst [vmem:[#allocation2 + $0x18] sm:$0xff] %v132
    %150 = vst [vmem:[#allocation2 + $0x20] sm:$0xff] %v136
    %151 = vst [vmem:[#allocation2 + $0x28] sm:$0xff] %v138
    %152 = vst [vmem:[#allocation2 + $0x30] sm:$0xff] %v142
    %153 = vst [vmem:[#allocation2 + $0x38] sm:$0xff] %v144
    %v154 = vld [vmem:[%s2] sm:$0xff]
    %v155 = vld [vmem:[%s2 + $0x8] sm:$0xff]
    %v156 = vld [vmem:[%s2 + $0x10] sm:$0xff]
    %v157 = vld [vmem:[%s2 + $0x18] sm:$0xff]
    %v158 = vld [vmem:[%s2 + $0x20] sm:$0xff]
    %v159 = vld [vmem:[%s2 + $0x28] sm:$0xff]
    %v160 = vld [vmem:[%s2 + $0x30] sm:$0xff]
    %v161 = vld [vmem:[%s2 + $0x38] sm:$0xff]
    %v162 = vld [vmem:[%s2 + $0x40] sm:$0xff]
    %v163 = vld [vmem:[%s2 + $0x48] sm:$0xff]
    %v164 = vld [vmem:[%s2 + $0x50] sm:$0xff]
    %v165 = vld [vmem:[%s2 + $0x58] sm:$0xff]
    %v166 = vld [vmem:[%s2 + $0x60] sm:$0xff]
    %v167 = vld [vmem:[%s2 + $0x68] sm:$0xff]
    %v168 = vld [vmem:[%s2 + $0x70] sm:$0xff]
    %v169 = vld [vmem:[%s2 + $0x78] sm:$0xff]
    %170 = vmatprep.subr.mxu0 0.0
    %171 = vmatpush1.msra.mxu0 %v154
    %172 = vmatprep.subr.mxu0 0.0
    %173 = vmatpush1.msra.mxu0 %v155
    %174 = vmatprep.subr.mxu0 0.0
    %175 = vmatpush1.msra.mxu0 %v156
    %176 = vmatprep.subr.mxu0 0.0
    %177 = vmatpush1.msra.mxu0 %v157
    %178 = vmatprep.subr.mxu0 0.0
    %179 = vmatpush1.msra.mxu0 %v158
    %180 = vmatprep.subr.mxu0 0.0
    %181 = vmatpush1.msra.mxu0 %v159
    %182 = vmatprep.subr.mxu0 0.0
    %183 = vmatpush1.msra.mxu0 %v160
    %184 = vmatprep.subr.mxu0 0.0
    %185 = vmatpush1.msra.mxu0 %v161
    %186 = vmatprep.subr.mxu0 0.0
    %187 = vmatpush1.msra.mxu0 %v162
    %188 = vmatprep.subr.mxu0 0.0
    %189 = vmatpush1.msra.mxu0 %v163
    %190 = vmatprep.subr.mxu0 0.0
    %191 = vmatpush1.msra.mxu0 %v164
    %192 = vmatprep.subr.mxu0 0.0
    %193 = vmatpush1.msra.mxu0 %v165
    %194 = vmatprep.subr.mxu0 0.0
    %195 = vmatpush1.msra.mxu0 %v166
    %196 = vmatprep.subr.mxu0 0.0
    %197 = vmatpush1.msra.mxu0 %v167
    %198 = vmatprep.subr.mxu0 0.0
    %199 = vmatpush1.msra.mxu0 %v168
    %200 = vmatprep.subr.mxu0 0.0
    %201 = vmatpush1.msra.mxu0 %v169
    %202 = vmatprep.subr.mxu0 0.0
    %203 = vmatpush1.msra.mxu0 0.0
    %204 = vmatprep.subr.mxu0 0.0
    %205 = vmatpush1.msra.mxu0 0.0
    %206 = vmatprep.subr.mxu0 0.0
    %207 = vmatpush1.msra.mxu0 0.0
    %208 = vmatprep.subr.mxu0 0.0
    %209 = vmatpush1.msra.mxu0 0.0
    %210 = vmatprep.subr.mxu0 0.0
    %211 = vmatpush1.msra.mxu0 0.0
    %212 = vmatprep.subr.mxu0 0.0
    %213 = vmatpush1.msra.mxu0 0.0
    %214 = vmatprep.subr.mxu0 0.0
    %215 = vmatpush1.msra.mxu0 0.0
    %216 = vmatprep.subr.mxu0 0.0
    %217 = vmatpush1.msra.mxu0 0.0
    %218 = vmatprep.subr.mxu0 0.0
    %219 = vmatpush1.msra.mxu0 0.0
    %220 = vmatprep.subr.mxu0 0.0
    %221 = vmatpush1.msra.mxu0 0.0
    %222 = vmatprep.subr.mxu0 0.0
    %223 = vmatpush1.msra.mxu0 0.0
    %224 = vmatprep.subr.mxu0 0.0
    %225 = vmatpush1.msra.mxu0 0.0
    %226 = vmatprep.subr.mxu0 0.0
    %227 = vmatpush1.msra.mxu0 0.0
    %228 = vmatprep.subr.mxu0 0.0
    %229 = vmatpush1.msra.mxu0 0.0
    %230 = vmatprep.subr.mxu0 0.0
    %231 = vmatpush1.msra.mxu0 0.0
    %232 = vmatprep.subr.mxu0 0.0
    %233 = vmatpush1.msra.mxu0 0.0
    %234 = vmatprep.mubr.f32.mxu0 0.0
    %235 = vmatmul.mubr.f32.gmra.mrb[0].mxu0 %v21
    %v236 = vpop.f32.mrb[0].mxu0
    %v237 = vadd.f32 0.0, %v236
    %v238 = vpop.f32.mrb[0].mxu0
    %239 = vmatprep.mubr.f32.mxu0 0.0
    %240 = vmatmul.mubr.f32.gmra.mrb[0].mxu0 %v22
    %v241 = vpop.f32.mrb[0].mxu0
    %v242 = vadd.f32 0.0, %v241
    %v243 = vpop.f32.mrb[0].mxu0
    %244 = vmatprep.mubr.f32.mxu0 0.0
    %245 = vmatmul.mubr.f32.gmra.mrb[0].mxu0 %v23
    %v246 = vpop.f32.mrb[0].mxu0
    %v247 = vadd.f32 0.0, %v246
    %v248 = vpop.f32.mrb[0].mxu0
    %249 = vmatprep.mubr.f32.mxu0 0.0
    %250 = vmatmul.mubr.f32.gmra.mrb[0].mxu0 %v24
    %v251 = vpop.f32.mrb[0].mxu0
    %v252 = vadd.f32 0.0, %v251
    %v253 = vpop.f32.mrb[0].mxu0
    %254 = vdwg.mxu0
    %vm255 = vcmask 130048
    %256 = vst.msk [vmem:[%s5] sm:$0xff] %vm255, %v237
    %257 = vst.msk [vmem:[%s5 + $0x8] sm:$0xff] %vm255, %v242
    %258 = vst.msk [vmem:[%s5 + $0x10] sm:$0xff] %vm255, %v247
    %259 = vst.msk [vmem:[%s5 + $0x18] sm:$0xff] %vm255, %v252
    %v260 = vld [vmem:[%s3] sm:$0xff]
    %v261 = vld [vmem:[%s3 + $0x8] sm:$0xff]
    %v262 = vld [vmem:[%s3 + $0x10] sm:$0xff]
    %v263 = vld [vmem:[%s3 + $0x18] sm:$0xff]
    %v264 = vld [vmem:[%s3 + $0x20] sm:$0xff]
    %v265 = vld [vmem:[%s3 + $0x28] sm:$0xff]
    %v266 = vld [vmem:[%s3 + $0x30] sm:$0xff]
    %v267 = vld [vmem:[%s3 + $0x38] sm:$0xff]
    %v268 = vld [vmem:[%s3 + $0x40] sm:$0xff]
    %v269 = vld [vmem:[%s3 + $0x48] sm:$0xff]
    %v270 = vld [vmem:[%s3 + $0x50] sm:$0xff]
    %v271 = vld [vmem:[%s3 + $0x58] sm:$0xff]
    %v272 = vld [vmem:[%s3 + $0x60] sm:$0xff]
    %v273 = vld [vmem:[%s3 + $0x68] sm:$0xff]
    %v274 = vld [vmem:[%s3 + $0x70] sm:$0xff]
    %v275 = vld [vmem:[%s3 + $0x78] sm:$0xff]
    %276 = vmatprep.subr.mxu0 0.0
    %277 = vmatpush1.msra.mxu0 %v260
    %278 = vmatprep.subr.mxu0 0.0
    %279 = vmatpush1.msra.mxu0 %v261
    %280 = vmatprep.subr.mxu0 0.0
    %281 = vmatpush1.msra.mxu0 %v262
    %282 = vmatprep.subr.mxu0 0.0
    %283 = vmatpush1.msra.mxu0 %v263
    %284 = vmatprep.subr.mxu0 0.0
    %285 = vmatpush1.msra.mxu0 %v264
    %286 = vmatprep.subr.mxu0 0.0
    %287 = vmatpush1.msra.mxu0 %v265
    %288 = vmatprep.subr.mxu0 0.0
    %289 = vmatpush1.msra.mxu0 %v266
    %290 = vmatprep.subr.mxu0 0.0
    %291 = vmatpush1.msra.mxu0 %v267
    %292 = vmatprep.subr.mxu0 0.0
    %293 = vmatpush1.msra.mxu0 %v268
    %294 = vmatprep.subr.mxu0 0.0
    %295 = vmatpush1.msra.mxu0 %v269
    %296 = vmatprep.subr.mxu0 0.0
    %297 = vmatpush1.msra.mxu0 %v270
    %298 = vmatprep.subr.mxu0 0.0
    %299 = vmatpush1.msra.mxu0 %v271
    %300 = vmatprep.subr.mxu0 0.0
    %301 = vmatpush1.msra.mxu0 %v272
    %302 = vmatprep.subr.mxu0 0.0
    %303 = vmatpush1.msra.mxu0 %v273
    %304 = vmatprep.subr.mxu0 0.0
    %305 = vmatpush1.msra.mxu0 %v274
    %306 = vmatprep.subr.mxu0 0.0
    %307 = vmatpush1.msra.mxu0 %v275
    %308 = vmatprep.subr.mxu0 0.0
    %309 = vmatpush1.msra.mxu0 0.0
    %310 = vmatprep.subr.mxu0 0.0
    %311 = vmatpush1.msra.mxu0 0.0
    %312 = vmatprep.subr.mxu0 0.0
    %313 = vmatpush1.msra.mxu0 0.0
    %314 = vmatprep.subr.mxu0 0.0
    %315 = vmatpush1.msra.mxu0 0.0
    %316 = vmatprep.subr.mxu0 0.0
    %317 = vmatpush1.msra.mxu0 0.0
    %318 = vmatprep.subr.mxu0 0.0
    %319 = vmatpush1.msra.mxu0 0.0
    %320 = vmatprep.subr.mxu0 0.0
    %321 = vmatpush1.msra.mxu0 0.0
    %322 = vmatprep.subr.mxu0 0.0
    %323 = vmatpush1.msra.mxu0 0.0
    %324 = vmatprep.subr.mxu0 0.0
    %325 = vmatpush1.msra.mxu0 0.0
    %326 = vmatprep.subr.mxu0 0.0
    %327 = vmatpush1.msra.mxu0 0.0
    %328 = vmatprep.subr.mxu0 0.0
    %329 = vmatpush1.msra.mxu0 0.0
    %330 = vmatprep.subr.mxu0 0.0
    %331 = vmatpush1.msra.mxu0 0.0
    %332 = vmatprep.subr.mxu0 0.0
    %333 = vmatpush1.msra.mxu0 0.0
    %334 = vmatprep.subr.mxu0 0.0
    %335 = vmatpush1.msra.mxu0 0.0
    %336 = vmatprep.subr.mxu0 0.0
    %337 = vmatpush1.msra.mxu0 0.0
    %338 = vmatprep.subr.mxu0 0.0
    %339 = vmatpush1.msra.mxu0 0.0
    %340 = vmatprep.mubr.f32.mxu0 0.0
    %341 = vmatmul.mubr.f32.gmra.mrb[0].mxu0 %v21
    %v342 = vpop.f32.mrb[0].mxu0
    %v343 = vadd.f32 0.0, %v342
    %v344 = vpop.f32.mrb[0].mxu0
    %345 = vmatprep.mubr.f32.mxu0 0.0
    %346 = vmatmul.mubr.f32.gmra.mrb[0].mxu0 %v22
    %v347 = vpop.f32.mrb[0].mxu0
    %v348 = vadd.f32 0.0, %v347
    %v349 = vpop.f32.mrb[0].mxu0
    %350 = vmatprep.mubr.f32.mxu0 0.0
    %351 = vmatmul.mubr.f32.gmra.mrb[0].mxu0 %v23
    %v352 = vpop.f32.mrb[0].mxu0
    %v353 = vadd.f32 0.0, %v352
    %v354 = vpop.f32.mrb[0].mxu0
    %355 = vmatprep.mubr.f32.mxu0 0.0
    %356 = vmatmul.mubr.f32.gmra.mrb[0].mxu0 %v24
    %v357 = vpop.f32.mrb[0].mxu0
    %v358 = vadd.f32 0.0, %v357
    %v359 = vpop.f32.mrb[0].mxu0
    %360 = vdwg.mxu0
    %361 = vst.msk [vmem:[%s6] sm:$0xff] %vm255, %v343
    %362 = vst.msk [vmem:[%s6 + $0x8] sm:$0xff] %vm255, %v348
    %363 = vst.msk [vmem:[%s6 + $0x10] sm:$0xff] %vm255, %v353
    %364 = vst.msk [vmem:[%s6 + $0x18] sm:$0xff] %vm255, %v358
    // Predicated region
    $region18: #{tpu_custom_call.1} parent=1 // pred_check
      _
    $region19: #{tpu_custom_call.1} parent=1 // pred_check_branch
      %366 = sbr.rel (0) target = $region21
    $region20: #{tpu_custom_call.1} parent=1 // pred_region
      %s368 = ssub.s32 1024, 1024
      %369 = vsyncadd [#allocation3], %s368
      %s370 = sshll.u32 [#allocation2], 4
      %s371 = int_to_ptr.vmem [resolvable:$true] %s370
      %376 = dma.vmem_to_hbm [thread:$0]  %s371, 1024, %s4, [#allocation3], 256, 256, 16
    $region21: #{tpu_custom_call.1} parent=1 // pred_fallthru
      _
    // Predicated region
    $region22: #{tpu_custom_call.1} parent=1 // pred_check
      _
    $region23: #{tpu_custom_call.1} parent=1 // pred_check_branch
      %378 = sbr.rel (0) target = $region25
    $region24: #{tpu_custom_call.1} parent=1 // pred_region
      _
    $region25: #{tpu_custom_call.1} parent=1 // pred_fallthru
      _
    // Predicated region
    $region26: #{tpu_custom_call.1} parent=1 // pred_check
      _
    $region27: #{tpu_custom_call.1} parent=1 // pred_check_branch
      %380 = sbr.rel (0) target = $region29
    $region28: #{tpu_custom_call.1} parent=1 // pred_region
      _
    $region29: #{tpu_custom_call.1} parent=1 // pred_fallthru
      _
    // Predicated region
    $region30: #{tpu_custom_call.1} parent=1 // pred_check
      _
    $region31: #{tpu_custom_call.1} parent=1 // pred_check_branch
      %382 = sbr.rel (0) target = $region33
    $region32: #{tpu_custom_call.1} parent=1 // pred_region
      %383 = dma.done [#allocation3], 1024
    $region33: #{tpu_custom_call.1} parent=1 // pred_fallthru
      _
    // Predicated region
    $region34: #{tpu_custom_call.1} parent=1 // pred_check
      _
    $region35: #{tpu_custom_call.1} parent=1 // pred_check_branch
      %385 = sbr.rel (0) target = $region37
    $region36: #{tpu_custom_call.1} parent=1 // pred_region
      _
    $region37: #{tpu_custom_call.1} parent=1 // pred_fallthru
      _
    // Predicated region
    $region38: #{tpu_custom_call.1} parent=1 // pred_check
      _
    $region39: #{tpu_custom_call.1} parent=1 // pred_check_branch
      %387 = sbr.rel (0) target = $region41
    $region40: #{tpu_custom_call.1} parent=1 // pred_region
      _
    $region41: #{tpu_custom_call.1} parent=1 // pred_fallthru
      _
    %388 = vsyncpa [#allocation3], 1

</llo_original>
